<compile_context>
chip_gen: v7x
topology: tpu7x:2x2x1
jax: 0.10.0
libtpu: 0.0.40
codegen_flags: <defaults>
</compile_context>

<pallas_src>
import functools

import jax
import jax.numpy as jnp
from jax import lax
from jax.experimental import pallas as pl
from jax.experimental.pallas import tpu as pltpu


def _make_frn_kernel(inv_hw):
    inv_hw = float(inv_hw)

    def _frn_kernel(x_ref, w_ref, b_ref, eps_ref, o_ref):
        # x_ref / o_ref : (R, H*W) VMEM tile (R rows == R (n, c) planes)
        # w_ref / b_ref : (R, 1) f32 per-row affine params
        # eps_ref       : (1,)  SMEM scalar, already abs()'d in the wrapper
        x = x_ref[...].astype(jnp.float32)

        # Per-row mean of squares: sum over lanes (XLU), constant scale (VPU).
        nu2 = jnp.sum(x * x, axis=-1, keepdims=True) * inv_hw        # (R, 1)
        # Fold weight into the normalization scale: all (R, 1) work.
        scale = w_ref[...] * lax.rsqrt(nu2 + eps_ref[0])             # EUP rsqrt

        # Per element: one mul + one add.
        o_ref[...] = (x * scale + b_ref[...]).astype(o_ref.dtype)

    return _frn_kernel


@functools.partial(jax.jit, static_argnames=("target_block_bytes",))
def filter_response_norm_2d(x, weight, bias, eps, *, target_block_bytes=4 << 20):
    """x: (N, C, H, W). weight/bias: (C,)-like. eps: (1,). Returns (N, C, H, W)."""
    N, C, H, W = x.shape
    NC = N * C
    HW = H * W
    itemsize = jnp.dtype(x.dtype).itemsize

    # --- choose row-block size R (multiple of 8; 16 for sub-32-bit dtypes) ---
    sub = 16 if itemsize < 4 else 8
    rows_for_budget = max(1, target_block_bytes // max(1, HW * itemsize))
    R = max(sub, (rows_for_budget // sub) * sub)
    # Don't build blocks bigger than the (sublane-rounded) problem.
    R = min(R, ((NC + sub - 1) // sub) * sub)
    # TODO(synk): if H*W alone is so large that an (sub, H*W) tile blows VMEM,
    # a two-pass split-HW reduction would be needed; not required for typical
    # FRN feature-map sizes.

    # --- flatten; no padding / extra HBM copy needed (partial last block is
    #     masked by Pallas) ---
    x2 = x.reshape(NC, HW)

    # Per-row affine params: row n*C + c -> weight[c], bias[c].
    w_rows = jnp.tile(weight.reshape(-1).astype(jnp.float32), N).reshape(NC, 1)
    b_rows = jnp.tile(bias.reshape(-1).astype(jnp.float32), N).reshape(NC, 1)

    eps_abs = jnp.abs(eps).astype(jnp.float32).reshape(1)

    # --- explicit VMEM budget: double-buffered input + output tiles ---
    tile_bytes = R * HW * itemsize
    vmem_needed = 4 * tile_bytes + 4 * R * 4 * 2 + (2 << 20)
    vmem_limit = int(min(48 << 20, max(32 << 20, vmem_needed)))

    grid = (pl.cdiv(NC, R),)
    out2 = pl.pallas_call(
        _make_frn_kernel(1.0 / HW),
        out_shape=jax.ShapeDtypeStruct((NC, HW), x.dtype),
        grid=grid,
        in_specs=[
            pl.BlockSpec((R, HW), lambda i: (i, 0)),
            pl.BlockSpec((R, 1), lambda i: (i, 0)),
            pl.BlockSpec((R, 1), lambda i: (i, 0)),
            pl.BlockSpec(memory_space=pltpu.MemorySpace.SMEM),
        ],
        out_specs=pl.BlockSpec((R, HW), lambda i: (i, 0)),
        compiler_params=pltpu.CompilerParams(
            dimension_semantics=("parallel",),
            vmem_limit_bytes=vmem_limit,
        ),
    )(x2, w_rows, b_rows, eps_abs)

    return out2.reshape(N, C, H, W)


def frn_reference(x, weight, bias, eps):
    """Pure-JAX reference matching the PyTorch forward exactly."""
    xf = x.astype(jnp.float32)
    nu2 = jnp.mean(xf * xf, axis=(2, 3), keepdims=True)
    y = xf * lax.rsqrt(nu2 + jnp.abs(eps[0]))
    w = weight.reshape(1, -1, 1, 1)
    b = bias.reshape(1, -1, 1, 1)
    return (w * y + b).astype(x.dtype)


if __name__ == "__main__":
    N, C, H, W = 2, 4, 16, 16
    key = jax.random.PRNGKey(0)
    kx, kw, kb = jax.random.split(key, 3)

    x = jax.random.normal(kx, (N, C, H, W), dtype=jnp.float32)
    # Learnable params: exercise the affine path with deterministic non-trivial
    # values (reset_parameters() would give ones/zeros; any values are valid).
    weight = 1.0 + 0.1 * jax.random.normal(kw, (C,), dtype=jnp.float32)
    bias = 0.1 * jax.random.normal(kb, (C,), dtype=jnp.float32)
    eps = jnp.array([1e-6], dtype=jnp.float32)

    out = filter_response_norm_2d(x, weight, bias, eps)
    out = jax.block_until_ready(out)

    ref = frn_reference(x, weight, bias, eps)
    assert out.shape == (N, C, H, W)
    assert jnp.allclose(out, ref, atol=1e-5, rtol=1e-5)

    print("KERNEL_OK")
</pallas_src>

<mosaic_0001>
module attributes {stable_mosaic.version = 11 : i64} {
  func.func @_frn_kernel(%arg0: i32, %arg1: memref<8x256xf32, #tpu.memory_space<vmem>>, %arg2: memref<8x1xf32, #tpu.memory_space<vmem>>, %arg3: memref<8x1xf32, #tpu.memory_space<vmem>>, %arg4: memref<1xf32, #tpu.memory_space<smem>>, %arg5: memref<8x256xf32, #tpu.memory_space<vmem>>) attributes {dimension_semantics = [#tpu.dimension_semantics<parallel>], iteration_bounds = array<i64: 1>, scalar_prefetch = 0 : i64, scratch_operands = 0 : i64, tpu.core_type = #tpu.core_type<tc>, window_params = [{transform_indices = @transform_0, window_bounds = array<i64: 8, 256>}, {transform_indices = @transform_1, window_bounds = array<i64: 8, 1>}, {transform_indices = @transform_2, window_bounds = array<i64: 8, 1>}, {transform_indices = @transform_3, window_bounds = array<i64: 1>}, {transform_indices = @transform_4, window_bounds = array<i64: 8, 256>}]} {
    %c0 = arith.constant 0 : index
    %c0_0 = arith.constant 0 : index
    %0 = vector.load %arg1[%c0, %c0_0] : memref<8x256xf32, #tpu.memory_space<vmem>>, vector<8x256xf32>
    %1 = arith.mulf %0, %0 : vector<8x256xf32>
    %cst = arith.constant dense<0.000000e+00> : vector<8xf32>
    %2 = vector.multi_reduction <add>, %1, %cst [1] : vector<8x256xf32> to vector<8xf32>
    %3 = vector.shape_cast %2 : vector<8xf32> to vector<8x1xf32>
    %cst_1 = arith.constant 3.906250e-03 : f32
    %4 = vector.broadcast %cst_1 : f32 to vector<8x1xf32>
    %5 = arith.mulf %3, %4 : vector<8x1xf32>
    %c0_2 = arith.constant 0 : index
    %c0_3 = arith.constant 0 : index
    %6 = vector.load %arg2[%c0_2, %c0_3] : memref<8x1xf32, #tpu.memory_space<vmem>>, vector<8x1xf32>
    %c0_4 = arith.constant 0 : index
    %7 = memref.load %arg4[%c0_4] : memref<1xf32, #tpu.memory_space<smem>>
    %8 = vector.broadcast %7 : f32 to vector<8x1xf32>
    %9 = arith.addf %5, %8 : vector<8x1xf32>
    %10 = math.rsqrt %9 : vector<8x1xf32>
    %11 = arith.mulf %6, %10 : vector<8x1xf32>
    %12 = vector.broadcast %11 : vector<8x1xf32> to vector<8x256xf32>
    %13 = arith.mulf %0, %12 : vector<8x256xf32>
    %c0_5 = arith.constant 0 : index
    %c0_6 = arith.constant 0 : index
    %14 = vector.load %arg3[%c0_5, %c0_6] : memref<8x1xf32, #tpu.memory_space<vmem>>, vector<8x1xf32>
    %15 = vector.broadcast %14 : vector<8x1xf32> to vector<8x256xf32>
    %16 = arith.addf %13, %15 : vector<8x256xf32>
    %c0_7 = arith.constant 0 : index
    %c0_8 = arith.constant 0 : index
    %17 = vector.load %arg5[%c0_7, %c0_8] : memref<8x256xf32, #tpu.memory_space<vmem>>, vector<8x256xf32>
    tpu.vector_store %arg5[%c0_7, %c0_8], %16 {strides = array<i32>} : memref<8x256xf32, #tpu.memory_space<vmem>>, vector<8x256xf32>,
    return
  }
  func.func @transform_0(%arg0: i32) -> (i32, i32) {
    %c0_i32 = arith.constant 0 : i32
    %c0_i32_0 = arith.constant 0 : i32
    return %arg0, %c0_i32 : i32, i32
  }
  func.func @transform_1(%arg0: i32) -> (i32, i32) {
    %c0_i32 = arith.constant 0 : i32
    %c0_i32_0 = arith.constant 0 : i32
    return %arg0, %c0_i32 : i32, i32
  }
  func.func @transform_2(%arg0: i32) -> (i32, i32) {
    %c0_i32 = arith.constant 0 : i32
    %c0_i32_0 = arith.constant 0 : i32
    return %arg0, %c0_i32 : i32, i32
  }
  func.func @transform_3(%arg0: i32) -> i32 {
    %c0_i32 = arith.constant 0 : i32
    %c0_i32_0 = arith.constant 0 : i32
    return %c0_i32 : i32
  }
  func.func @transform_4(%arg0: i32) -> (i32, i32) {
    %c0_i32 = arith.constant 0 : i32
    %c0_i32_0 = arith.constant 0 : i32
    return %arg0, %c0_i32 : i32, i32
  }
}

</mosaic_0001>

<llo_original>
// kernel: tile.1
$region0: #{tile.1}
  %s0 = inlined_call_operand.vmem [shape: f32[2,4], index: 0, kind: input, shape index: {}]
  %s1 = inlined_call_operand.vmem [shape: f32[8,1], index: 1, kind: output, shape index: {}]
  $region1: #{tile.1} parent=0
    #allocation0 [shape = 'u8[4096]{0}', space=vmem, size = 0x1000, scoped, tag = 'scoped mem for input reshape']
    %s3 = sshllo.u32 0, 2
    %v4 = vld [vmem:[%s0] sm:%s3]
    %5 = vst [vmem:[#allocation0] sm:%s3] %v4
    %v6 = vld [vmem:[#allocation0] sm:$0x3]
    %vm7 = vcmask 7168
    %8 = vst.msk [vmem:[%s1] ss:$4 sm:$0x3] %vm7, %v6
    %v9 = vld [vmem:[#allocation0] sm:$0x3]
    %10 = vrot.lane.b32.xlu0 %v9, 127
    %v11 = vpop.permute.xlu0 %10
    %vm12 = vcmask 7168
    %s13 = scalar_lea.vmem %s1, 1
    %14 = vst.msk [vmem:[%s13] ss:$4 sm:$0x3] %vm12, %v11
    %v15 = vld [vmem:[#allocation0] sm:$0x3]
    %16 = vrot.lane.b32.xlu0 %v15, 126
    %v17 = vpop.permute.xlu0 %16
    %vm18 = vcmask 7168
    %s19 = scalar_lea.vmem %s1, 2
    %20 = vst.msk [vmem:[%s19] ss:$4 sm:$0x3] %vm18, %v17
    %v21 = vld [vmem:[#allocation0] sm:$0x3]
    %22 = vrot.lane.b32.xlu0 %v21, 125
    %v23 = vpop.permute.xlu0 %22
    %vm24 = vcmask 7168
    %s25 = scalar_lea.vmem %s1, 3
    %26 = vst.msk [vmem:[%s25] ss:$4 sm:$0x3] %vm24, %v23

// kernel: tile.13
$region0: #{tile.13}
  #allocation0 [shape = 's32[1]{0}', space=sflag, size = 0x4, scoped, tag = 'scoped memory for tile.13']
  %s0 = inlined_call_operand.vmem [shape: f32[4], index: 0, kind: input, shape index: {}]
  %s1 = inlined_call_operand.vmem [shape: f32[2,4], index: 1, kind: output, shape index: {}]
  // Predicated region
  $region2: #{tile.13} parent=0 // pred_check
    _
  $region3: #{tile.13} parent=0 // pred_check_branch
    %3 = sbr.rel (0) target = $region5
  $region4: #{tile.13} parent=0 // pred_region
    _
  $region5: #{tile.13} parent=0 // pred_fallthru
    _
  %v4 = vld [vmem:[%s0] ss:$0 sm:$0xff]
  %5 = vst [vmem:[%s1] sm:$0x3] %v4

// kernel: filter_response_norm_2d.1
$region0: #{filter_response_norm_2d.1}
  #allocation0 [shape = 'u32[]', space=smem, size = 0x4, offset = 0x4, fixed_abs, tag = 'smem constant byte address 0x4 - core index']
  #allocation1 [shape = 'u32[144,128]{1,0:T(1,128)}', space=vmem, size = 0x12000, scoped, tag = 'internal scratch']
  #allocation2 [shape = 'f32[1]{0:T(128)S(6)}', space=smem, size = 0x200, scoped, tag = 'scoped memory for filter_response_norm_2d.1']
  %s0 = inlined_call_operand.vmem [shape: f32[8,256], index: 0, kind: input, shape index: {}]
  %s1 = inlined_call_operand.vmem [shape: f32[8,1], index: 1, kind: input, shape index: {}]
  %s2 = inlined_call_operand.vmem [shape: f32[8,1], index: 2, kind: input, shape index: {}]
  %s3 = inlined_call_operand.<no memory space> [shape: f32[1], index: 3, kind: input, shape index: {}]
  %s4 = inlined_call_operand.vmem [shape: f32[8,256], index: 4, kind: output, shape index: {}]
  %s5 = sld [smem:[#allocation0]]
  $region26: #{filter_response_norm_2d.1} parent=0
    _
  %s7 = ssub.s32 1, %s5
  %s8 = scalar_select 0, %s7, %s5
  %9 = sst [smem:[#allocation2]] %s3
  // Predicated region
  $region2: #{filter_response_norm_2d.1} parent=0 // pred_check
    _
  $region3: #{filter_response_norm_2d.1} parent=0 // pred_check_branch
    %11 = sbr.rel (0) target = $region5
  $region4: #{filter_response_norm_2d.1} parent=0 // pred_region
    _
  $region5: #{filter_response_norm_2d.1} parent=0 // pred_fallthru
    _
  // Predicated region
  $region6: #{filter_response_norm_2d.1} parent=0 // pred_check
    _
  $region7: #{filter_response_norm_2d.1} parent=0 // pred_check_branch
    %13 = sbr.rel (0) target = $region9
  $region8: #{filter_response_norm_2d.1} parent=0 // pred_region
    _
  $region9: #{filter_response_norm_2d.1} parent=0 // pred_fallthru
    _
  // Predicated region
  $region10: #{filter_response_norm_2d.1} parent=0 // pred_check
    _
  $region11: #{filter_response_norm_2d.1} parent=0 // pred_check_branch
    %15 = sbr.rel (0) target = $region13
  $region12: #{filter_response_norm_2d.1} parent=0 // pred_region
    _
  $region13: #{filter_response_norm_2d.1} parent=0 // pred_fallthru
    _
  // Predicated region
  $region14: #{filter_response_norm_2d.1} parent=0 // pred_check
    _
  $region15: #{filter_response_norm_2d.1} parent=0 // pred_check_branch
    %17 = sbr.rel (0) target = $region17
  $region16: #{filter_response_norm_2d.1} parent=0 // pred_region
    _
  $region17: #{filter_response_norm_2d.1} parent=0 // pred_fallthru
    _
  %v18 = vld [vmem:[%s0] sm:$0xff]
  %v19 = vld [vmem:[%s0 + $0x8] sm:$0xff]
  %v20 = vmul.f32 %v18, %v18
  %v21 = vmul.f32 %v19, %v19
  %v22 = vadd.f32 %v20, %v21
  %23 = vadd.xlane.f32.xlu0 %v22
  %v24 = vpop.xlane.xlu0 %23
  %v25 = vmul.f32 %v24, 0.00390625
  %v26 = vld [vmem:[%s1] sm:$0xff]
  %s27 = sld [smem:[#allocation2]]
  %v28 = vstv %s27
  %v29 = vadd.f32 %v25, %v28
  %v30 = vrsqrt.pop %v29
  %v31 = vmul.f32 %v26, %v30
  %33 = vset.pattern.permute.xlu0 0
  %34 = vperm.xlu0 %33, %v31
  %v35 = vpop.permute.xlu0 %34
  %v37 = vmul.f32 %v18, %v35
  %v38 = vmul.f32 %v19, %v35
  %v39 = vld [vmem:[%s2] sm:$0xff]
  %41 = vset.pattern.permute.xlu0 0
  %42 = vperm.xlu0 %41, %v39
  %v43 = vpop.permute.xlu0 %42
  %v45 = vadd.f32 %v37, %v43
  %v46 = vadd.f32 %v38, %v43
  %47 = vst [vmem:[%s4] sm:$0xff] %v45
  %48 = vst [vmem:[%s4 + $0x8] sm:$0xff] %v46
  // Predicated region
  $region18: #{filter_response_norm_2d.1} parent=0 // pred_check
    _
  $region19: #{filter_response_norm_2d.1} parent=0 // pred_check_branch
    %50 = sbr.rel (0) target = $region21
  $region20: #{filter_response_norm_2d.1} parent=0 // pred_region
    _
  $region21: #{filter_response_norm_2d.1} parent=0 // pred_fallthru
    _
  // Predicated region
  $region22: #{filter_response_norm_2d.1} parent=0 // pred_check
    _
  $region23: #{filter_response_norm_2d.1} parent=0 // pred_check_branch
    %52 = sbr.rel (0) target = $region25
  $region24: #{filter_response_norm_2d.1} parent=0 // pred_region
    _
  $region25: #{filter_response_norm_2d.1} parent=0 // pred_fallthru
    _

</llo_original>
